<compile_context>
chip_gen: v7x
topology: tpu7x:2x2x1
jax: 0.10.0
libtpu: 0.0.40
codegen_flags: <defaults>
</compile_context>

<pallas_src>
import functools

import jax
import jax.numpy as jnp
from jax.experimental import pallas as pl
from jax.experimental.pallas import tpu as pltpu

HIDDEN = 128  # fixed by the module: Linear(input_dim, 128) -> ReLU -> Linear(128, output_dim)


def _mlp_kernel(x_ref, w1_ref, b1_ref, w2_ref, b2_ref, o_ref):
    # x: (TB, D_in) f32 ; w1: (D_in, 128) bf16 ; b1: (1, 128) f32
    # w2: (128, D_out) bf16 ; b2: (1, D_out) f32 ; o: (TB, D_out) f32
    x = x_ref[...].astype(jnp.bfloat16)                      # in-kernel cast (VPU)
    h = jnp.dot(x, w1_ref[...], preferred_element_type=jnp.float32)
    h = jnp.maximum(h + b1_ref[...], 0.0)                    # f32 bias + ReLU
    out = jnp.dot(h.astype(jnp.bfloat16), w2_ref[...],       # bf16 operands, f32 acc
                  preferred_element_type=jnp.float32)
    o_ref[...] = (out + b2_ref[...]).astype(o_ref.dtype)     # unpadded (TB, D_out) store


def _choose_block_b(B):
    """Pick the batch tile: 1 block for small B, fat tiles (>=2 blocks) otherwise."""
    if B <= 256:
        return B                      # single launch, no per-step pipeline overhead
    tb = 512                          # fat tile: DMA/compute dominates the ~0.35us step cost
    if pl.cdiv(B, tb) < 2:            # keep >= 2 blocks so v7x's 2 TCs both get work
        tb = max(8, (((B + 1) // 2) + 7) // 8 * 8)
    return min(tb, B)


@functools.partial(jax.jit, static_argnames=("block_b",))
def dqn_forward(x, w1, b1, w2, b2, *, block_b=None):
    """x: (B, D_in) f32. w1/w2 ideally pre-converted to bf16 via prepare_params."""
    B, D_in = x.shape
    D_out = w2.shape[1]

    # Hoisted-weight path: only cast here if the caller passed raw f32 weights
    # (dtype is static under jit, so this is free when params were prepared once).
    if w1.dtype != jnp.bfloat16:
        w1 = w1.astype(jnp.bfloat16)
    if w2.dtype != jnp.bfloat16:
        w2 = w2.astype(jnp.bfloat16)
    b1 = b1.astype(jnp.float32)
    b2 = b2.astype(jnp.float32)

    TB = block_b if block_b is not None else _choose_block_b(B)
    grid_b = pl.cdiv(B, TB)           # partial last block: OOB rows masked on store

    return pl.pallas_call(
        _mlp_kernel,
        out_shape=jax.ShapeDtypeStruct((B, D_out), jnp.float32),
        grid_spec=pl.GridSpec(
            grid=(grid_b,),
            in_specs=[
                pl.BlockSpec((TB, D_in), lambda i: (i, 0)),       # x batch tile (streams)
                pl.BlockSpec((D_in, HIDDEN), lambda i: (0, 0)),   # W1 (VMEM-resident)
                pl.BlockSpec((1, HIDDEN), lambda i: (0, 0)),      # b1 (resident)
                pl.BlockSpec((HIDDEN, D_out), lambda i: (0, 0)),  # W2 (resident)
                pl.BlockSpec((1, D_out), lambda i: (0, 0)),       # b2 (resident)
            ],
            out_specs=pl.BlockSpec((TB, D_out), lambda i: (i, 0)),
        ),
        compiler_params=pltpu.CompilerParams(
            dimension_semantics=("parallel",)),  # batch axis shards across TCs on v7x
    )(x, w1, b1, w2, b2)


def init_params(key, input_dim, output_dim, hidden=HIDDEN):
    # Deterministic init mimicking PyTorch nn.Linear default:
    # U(-1/sqrt(fan_in), 1/sqrt(fan_in)) for both weight and bias.
    k1, k2, k3, k4 = jax.random.split(key, 4)
    bound1 = 1.0 / float(input_dim) ** 0.5
    bound2 = 1.0 / float(hidden) ** 0.5
    # Stored as (in, out) so the kernel computes x @ W (PyTorch stores (out, in)).
    w1 = jax.random.uniform(k1, (input_dim, hidden), jnp.float32, -bound1, bound1)
    b1 = jax.random.uniform(k2, (1, hidden), jnp.float32, -bound1, bound1)
    w2 = jax.random.uniform(k3, (hidden, output_dim), jnp.float32, -bound2, bound2)
    b2 = jax.random.uniform(k4, (1, output_dim), jnp.float32, -bound2, bound2)
    return w1, b1, w2, b2


def prepare_params(w1, b1, w2, b2):
    """One-time conversion: weights -> bf16 (MXU operands), biases stay f32."""
    return (w1.astype(jnp.bfloat16), b1.astype(jnp.float32),
            w2.astype(jnp.bfloat16), b2.astype(jnp.float32))


def reference_forward_f32(x, w1, b1, w2, b2):
    h = jnp.maximum(x @ w1 + b1, 0.0)
    return h @ w2 + b2


def reference_forward_bf16(x, w1, b1, w2, b2):
    # Same precision path as the kernel: bf16 matmul operands, f32 accumulation.
    h = jnp.dot(x.astype(jnp.bfloat16), w1.astype(jnp.bfloat16),
                preferred_element_type=jnp.float32)
    h = jnp.maximum(h + b1, 0.0)
    out = jnp.dot(h.astype(jnp.bfloat16), w2.astype(jnp.bfloat16),
                  preferred_element_type=jnp.float32)
    return out + b2


if __name__ == "__main__":
    key = jax.random.PRNGKey(0)
    k_x, k_p, k_x2 = jax.random.split(key, 3)

    # Small shapes consistent with the module (hidden=128 is fixed by DQNetwork).
    batch, input_dim, output_dim = 32, 16, 4
    x = jax.random.normal(k_x, (batch, input_dim), jnp.float32)
    w1, b1, w2, b2 = init_params(k_p, input_dim, output_dim)
    pw1, pb1, pw2, pb2 = prepare_params(w1, b1, w2, b2)   # weight cast done ONCE

    # Small-batch path: single block, no grid pipeline overhead.
    out = jax.block_until_ready(dqn_forward(x, pw1, pb1, pw2, pb2))
    assert out.shape == (batch, output_dim)

    # Tight check against a reference using the identical bf16-operand / f32-acc path.
    ref_bf16 = reference_forward_bf16(x, w1, b1, w2, b2)
    assert jnp.allclose(out, ref_bf16, atol=1e-2, rtol=1e-2)
    # Loose sanity check against the full-f32 PyTorch-equivalent forward.
    ref_f32 = reference_forward_f32(x, w1, b1, w2, b2)
    assert jnp.allclose(out, ref_f32, atol=1e-1, rtol=1e-1)

    # Tiled path: grid > 1 with a partial last block (tail rows masked on store).
    batch2 = 600
    x2 = jax.random.normal(k_x2, (batch2, input_dim), jnp.float32)
    out2 = jax.block_until_ready(dqn_forward(x2, pw1, pb1, pw2, pb2))
    assert out2.shape == (batch2, output_dim)
    ref2 = reference_forward_bf16(x2, w1, b1, w2, b2)
    assert jnp.allclose(out2, ref2, atol=1e-2, rtol=1e-2)

    print("KERNEL_OK")
</pallas_src>

<mosaic_0001>
module attributes {stable_mosaic.version = 11 : i64} {
  func.func @_mlp_kernel(%arg0: i32, %arg1: memref<32x16xf32, #tpu.memory_space<vmem>>, %arg2: memref<16x128xbf16, #tpu.memory_space<vmem>>, %arg3: memref<1x128xf32, #tpu.memory_space<vmem>>, %arg4: memref<128x4xbf16, #tpu.memory_space<vmem>>, %arg5: memref<1x4xf32, #tpu.memory_space<vmem>>, %arg6: memref<32x4xf32, #tpu.memory_space<vmem>>) attributes {dimension_semantics = [#tpu.dimension_semantics<parallel>], iteration_bounds = array<i64: 1>, scalar_prefetch = 0 : i64, scratch_operands = 0 : i64, tpu.core_type = #tpu.core_type<tc>, window_params = [{transform_indices = @transform_0, window_bounds = array<i64: 32, 16>}, {pipeline_mode = #tpu.pipeline_mode<synchronous>, transform_indices = @transform_1, window_bounds = array<i64: 16, 128>}, {pipeline_mode = #tpu.pipeline_mode<synchronous>, transform_indices = @transform_2, window_bounds = array<i64: 1, 128>}, {pipeline_mode = #tpu.pipeline_mode<synchronous>, transform_indices = @transform_3, window_bounds = array<i64: 128, 4>}, {pipeline_mode = #tpu.pipeline_mode<synchronous>, transform_indices = @transform_4, window_bounds = array<i64: 1, 4>}, {transform_indices = @transform_5, window_bounds = array<i64: 32, 4>}]} {
    %c0 = arith.constant 0 : index
    %c0_0 = arith.constant 0 : index
    %0 = vector.load %arg1[%c0, %c0_0] : memref<32x16xf32, #tpu.memory_space<vmem>>, vector<32x16xf32>
    %1 = arith.truncf %0 : vector<32x16xf32> to vector<32x16xbf16>
    %c0_1 = arith.constant 0 : index
    %c0_2 = arith.constant 0 : index
    %2 = vector.load %arg2[%c0_1, %c0_2] : memref<16x128xbf16, #tpu.memory_space<vmem>>, vector<16x128xbf16>
    %cst = arith.constant dense<0.000000e+00> : vector<32x128xf32>
    %3 = tpu.matmul %1, %2, %cst {dimension_numbers = #tpu.dot_dimension_numbers<[1], [0], [0], [1], [0, 0, 1, 1], [], []>} : vector<32x16xbf16>, vector<16x128xbf16>, vector<32x128xf32> -> vector<32x128xf32>
    %c0_3 = arith.constant 0 : index
    %c0_4 = arith.constant 0 : index
    %4 = vector.load %arg3[%c0_3, %c0_4] : memref<1x128xf32, #tpu.memory_space<vmem>>, vector<1x128xf32>
    %5 = vector.broadcast %4 : vector<1x128xf32> to vector<32x128xf32>
    %6 = arith.addf %3, %5 : vector<32x128xf32>
    %cst_5 = arith.constant 0.000000e+00 : f32
    %7 = vector.broadcast %cst_5 : f32 to vector<32x128xf32>
    %8 = arith.maximumf %6, %7 : vector<32x128xf32>
    %9 = arith.truncf %8 : vector<32x128xf32> to vector<32x128xbf16>
    %c0_6 = arith.constant 0 : index
    %c0_7 = arith.constant 0 : index
    %10 = vector.load %arg4[%c0_6, %c0_7] : memref<128x4xbf16, #tpu.memory_space<vmem>>, vector<128x4xbf16>
    %cst_8 = arith.constant dense<0.000000e+00> : vector<32x4xf32>
    %11 = tpu.matmul %9, %10, %cst_8 {dimension_numbers = #tpu.dot_dimension_numbers<[1], [0], [0], [1], [0, 0, 1, 1], [], []>} : vector<32x128xbf16>, vector<128x4xbf16>, vector<32x4xf32> -> vector<32x4xf32>
    %c0_9 = arith.constant 0 : index
    %c0_10 = arith.constant 0 : index
    %12 = vector.load %arg5[%c0_9, %c0_10] : memref<1x4xf32, #tpu.memory_space<vmem>>, vector<1x4xf32>
    %13 = vector.broadcast %12 : vector<1x4xf32> to vector<32x4xf32>
    %14 = arith.addf %11, %13 : vector<32x4xf32>
    %c0_11 = arith.constant 0 : index
    %c0_12 = arith.constant 0 : index
    %15 = vector.load %arg6[%c0_11, %c0_12] : memref<32x4xf32, #tpu.memory_space<vmem>>, vector<32x4xf32>
    tpu.vector_store %arg6[%c0_11, %c0_12], %14 {strides = array<i32>} : memref<32x4xf32, #tpu.memory_space<vmem>>, vector<32x4xf32>,
    return
  }
  func.func @transform_0(%arg0: i32) -> (i32, i32) {
    %c0_i32 = arith.constant 0 : i32
    %c0_i32_0 = arith.constant 0 : i32
    return %arg0, %c0_i32 : i32, i32
  }
  func.func @transform_1(%arg0: i32) -> (i32, i32) {
    %c0_i32 = arith.constant 0 : i32
    %c0_i32_0 = arith.constant 0 : i32
    %c0_i32_1 = arith.constant 0 : i32
    return %c0_i32, %c0_i32_0 : i32, i32
  }
  func.func @transform_2(%arg0: i32) -> (i32, i32) {
    %c0_i32 = arith.constant 0 : i32
    %c0_i32_0 = arith.constant 0 : i32
    %c0_i32_1 = arith.constant 0 : i32
    return %c0_i32, %c0_i32_0 : i32, i32
  }
  func.func @transform_3(%arg0: i32) -> (i32, i32) {
    %c0_i32 = arith.constant 0 : i32
    %c0_i32_0 = arith.constant 0 : i32
    %c0_i32_1 = arith.constant 0 : i32
    return %c0_i32, %c0_i32_0 : i32, i32
  }
  func.func @transform_4(%arg0: i32) -> (i32, i32) {
    %c0_i32 = arith.constant 0 : i32
    %c0_i32_0 = arith.constant 0 : i32
    %c0_i32_1 = arith.constant 0 : i32
    return %c0_i32, %c0_i32_0 : i32, i32
  }
  func.func @transform_5(%arg0: i32) -> (i32, i32) {
    %c0_i32 = arith.constant 0 : i32
    %c0_i32_0 = arith.constant 0 : i32
    return %arg0, %c0_i32 : i32, i32
  }
}

</mosaic_0001>

<llo_original>
// kernel: dqn_forward.1
$region0: #{dqn_forward.1}
  #allocation0 [shape = 'u32[]', space=smem, size = 0x4, offset = 0x4, fixed_abs, tag = 'smem constant byte address 0x4 - core index']
  #allocation1 [shape = 'u32[144,128]{1,0:T(1,128)}', space=vmem, size = 0x12000, scoped, tag = 'internal scratch']
  %s0 = inlined_call_operand.vmem [shape: f32[32,16], index: 0, kind: input, shape index: {}]
  %s1 = inlined_call_operand.vmem [shape: bf16[16,128], index: 1, kind: input, shape index: {}]
  %s2 = inlined_call_operand.vmem [shape: f32[1,128], index: 2, kind: input, shape index: {}]
  %s3 = inlined_call_operand.vmem [shape: bf16[128,4], index: 3, kind: input, shape index: {}]
  %s4 = inlined_call_operand.vmem [shape: f32[1,4], index: 4, kind: input, shape index: {}]
  %s5 = inlined_call_operand.vmem [shape: f32[32,4], index: 5, kind: output, shape index: {}]
  %s6 = sld [smem:[#allocation0]]
  $region30: #{dqn_forward.1} parent=0
    _
  %s8 = ssub.s32 1, %s6
  %s9 = scalar_select 0, %s8, %s6
  // Predicated region
  $region2: #{dqn_forward.1} parent=0 // pred_check
    _
  $region3: #{dqn_forward.1} parent=0 // pred_check_branch
    %11 = sbr.rel (0) target = $region5
  $region4: #{dqn_forward.1} parent=0 // pred_region
    _
  $region5: #{dqn_forward.1} parent=0 // pred_fallthru
    _
  // Predicated region
  $region6: #{dqn_forward.1} parent=0 // pred_check
    _
  $region7: #{dqn_forward.1} parent=0 // pred_check_branch
    %13 = sbr.rel (0) target = $region9
  $region8: #{dqn_forward.1} parent=0 // pred_region
    _
  $region9: #{dqn_forward.1} parent=0 // pred_fallthru
    _
  // Predicated region
  $region10: #{dqn_forward.1} parent=0 // pred_check
    _
  $region11: #{dqn_forward.1} parent=0 // pred_check_branch
    %15 = sbr.rel (0) target = $region13
  $region12: #{dqn_forward.1} parent=0 // pred_region
    _
  $region13: #{dqn_forward.1} parent=0 // pred_fallthru
    _
  // Predicated region
  $region14: #{dqn_forward.1} parent=0 // pred_check
    _
  $region15: #{dqn_forward.1} parent=0 // pred_check_branch
    %17 = sbr.rel (0) target = $region17
  $region16: #{dqn_forward.1} parent=0 // pred_region
    _
  $region17: #{dqn_forward.1} parent=0 // pred_fallthru
    _
  // Predicated region
  $region18: #{dqn_forward.1} parent=0 // pred_check
    _
  $region19: #{dqn_forward.1} parent=0 // pred_check_branch
    %19 = sbr.rel (0) target = $region21
  $region20: #{dqn_forward.1} parent=0 // pred_region
    _
  $region21: #{dqn_forward.1} parent=0 // pred_fallthru
    _
  %v21 = vld [vmem:[%s0] sm:$0xff]
  %v22 = vld [vmem:[%s0 + $0x8] sm:$0xff]
  %v23 = vld [vmem:[%s0 + $0x10] sm:$0xff]
  %v24 = vld [vmem:[%s0 + $0x18] sm:$0xff]
  %v25 = vpack.c.bf16 %v22, %v21
  %v26 = vpack.c.bf16 %v24, %v23
  %v27 = vld [vmem:[%s1] sm:$0xf]
  %v28 = vld [vmem:[%s1 + $0x4] sm:$0xf]
  %v29 = vld [vmem:[%s2] sm:$0x1]
  %v31 = vlaneseq
  %v32 = vshrl.u32 %v31, 7
  %v33 = vsub.s32 0, %v32
  %v34 = vrot.slane %v29, %v33
  %v38 = vunpack.c.l.b16 %v27
  %v39 = vunpack.c.l.b16 %v28
  %v40 = vpack.c.b16 %v39, %v38
  %vm42 = vcmask 130048
  %v44 = vsel %vm42, %v25, 0
  %v47 = vsel %vm42, %v26, 0
  %49 = vmatprep.subr.bf16.mxu0 0
  %50 = vmatpush1.bf16.msra.mxu0 %v40
  %51 = vmatprep.subr.bf16.mxu0 0
  %52 = vmatpush1.bf16.msra.mxu0 0
  %53 = vmatprep.subr.bf16.mxu0 0
  %54 = vmatpush1.bf16.msra.mxu0 0
  %55 = vmatprep.subr.bf16.mxu0 0
  %56 = vmatpush1.bf16.msra.mxu0 0
  %57 = vmatprep.subr.bf16.mxu0 0
  %58 = vmatpush1.bf16.msra.mxu0 0
  %59 = vmatprep.subr.bf16.mxu0 0
  %60 = vmatpush1.bf16.msra.mxu0 0
  %61 = vmatprep.subr.bf16.mxu0 0
  %62 = vmatpush1.bf16.msra.mxu0 0
  %63 = vmatprep.subr.bf16.mxu0 0
  %64 = vmatpush1.bf16.msra.mxu0 0
  %65 = vmatprep.subr.bf16.mxu0 0
  %66 = vmatpush1.bf16.msra.mxu0 0
  %67 = vmatprep.subr.bf16.mxu0 0
  %68 = vmatpush1.bf16.msra.mxu0 0
  %69 = vmatprep.subr.bf16.mxu0 0
  %70 = vmatpush1.bf16.msra.mxu0 0
  %71 = vmatprep.subr.bf16.mxu0 0
  %72 = vmatpush1.bf16.msra.mxu0 0
  %73 = vmatprep.subr.bf16.mxu0 0
  %74 = vmatpush1.bf16.msra.mxu0 0
  %75 = vmatprep.subr.bf16.mxu0 0
  %76 = vmatpush1.bf16.msra.mxu0 0
  %77 = vmatprep.subr.bf16.mxu0 0
  %78 = vmatpush1.bf16.msra.mxu0 0
  %79 = vmatprep.subr.bf16.mxu0 0
  %80 = vmatpush1.bf16.msra.mxu0 0
  %81 = vmatprep.mubr.bf16.mxu0 0
  %82 = vmatmul.mubr.bf16.gmra.mrb[0].mxu0 %v44
  %v83 = vpop.f32.mrb[0].mxu0
  %v84 = vadd.f32 %v34, %v83
  %v85 = vpop.f32.mrb[0].mxu0
  %v86 = vpop.f32.mrb[0].mxu0
  %v87 = vadd.f32 %v34, %v86
  %v88 = vpop.f32.mrb[0].mxu0
  %89 = vmatprep.mubr.bf16.mxu0 0
  %90 = vmatmul.mubr.bf16.gmra.mrb[0].mxu0 %v47
  %v91 = vpop.f32.mrb[0].mxu0
  %v92 = vadd.f32 %v34, %v91
  %v93 = vpop.f32.mrb[0].mxu0
  %v94 = vpop.f32.mrb[0].mxu0
  %v95 = vadd.f32 %v34, %v94
  %v96 = vpop.f32.mrb[0].mxu0
  %97 = vdwg.mxu0
  %v98 = vmax.f32 %v84, 0.0
  %v99 = vmax.f32 %v87, 0.0
  %v100 = vmax.f32 %v92, 0.0
  %v101 = vmax.f32 %v95, 0.0
  %v102 = vpack.c.bf16 %v99, %v98
  %v103 = vpack.c.bf16 %v101, %v100
  %v104 = vld [vmem:[%s3] sm:$0xf]
  %v105 = vld [vmem:[%s3 + $0x4] sm:$0xf]
  %v106 = vld [vmem:[%s3 + $0x8] sm:$0xf]
  %v107 = vld [vmem:[%s3 + $0xc] sm:$0xf]
  %v108 = vld [vmem:[%s3 + $0x10] sm:$0xf]
  %v109 = vld [vmem:[%s3 + $0x14] sm:$0xf]
  %v110 = vld [vmem:[%s3 + $0x18] sm:$0xf]
  %v111 = vld [vmem:[%s3 + $0x1c] sm:$0xf]
  %v112 = vld [vmem:[%s3 + $0x20] sm:$0xf]
  %v113 = vld [vmem:[%s3 + $0x24] sm:$0xf]
  %v114 = vld [vmem:[%s3 + $0x28] sm:$0xf]
  %v115 = vld [vmem:[%s3 + $0x2c] sm:$0xf]
  %v116 = vld [vmem:[%s3 + $0x30] sm:$0xf]
  %v117 = vld [vmem:[%s3 + $0x34] sm:$0xf]
  %v118 = vld [vmem:[%s3 + $0x38] sm:$0xf]
  %v119 = vld [vmem:[%s3 + $0x3c] sm:$0xf]
  %v120 = vld [vmem:[%s4] sm:$0x1]
  %v122 = vlaneseq
  %v123 = vshrl.u32 %v122, 7
  %v124 = vsub.s32 0, %v123
  %v125 = vrot.slane %v120, %v124
  %v143 = vunpack.c.l.b16 %v104
  %v144 = vunpack.c.l.b16 %v105
  %v145 = vunpack.c.l.b16 %v106
  %v146 = vunpack.c.l.b16 %v107
  %v147 = vunpack.c.l.b16 %v108
  %v148 = vunpack.c.l.b16 %v109
  %v149 = vunpack.c.l.b16 %v110
  %v150 = vunpack.c.l.b16 %v111
  %v151 = vunpack.c.l.b16 %v112
  %v152 = vunpack.c.l.b16 %v113
  %v153 = vunpack.c.l.b16 %v114
  %v154 = vunpack.c.l.b16 %v115
  %v155 = vunpack.c.l.b16 %v116
  %v156 = vunpack.c.l.b16 %v117
  %v157 = vunpack.c.l.b16 %v118
  %v158 = vunpack.c.l.b16 %v119
  %v159 = vpack.c.b16 %v144, %v143
  %v160 = vpack.c.b16 %v146, %v145
  %v161 = vpack.c.b16 %v148, %v147
  %v162 = vpack.c.b16 %v150, %v149
  %v163 = vpack.c.b16 %v152, %v151
  %v164 = vpack.c.b16 %v154, %v153
  %v165 = vpack.c.b16 %v156, %v155
  %v166 = vpack.c.b16 %v158, %v157
  %175 = vmatprep.subr.bf16.mxu0 0
  %176 = vmatpush1.bf16.msra.mxu0 %v159
  %177 = vmatprep.subr.bf16.mxu0 0
  %178 = vmatpush1.bf16.msra.mxu0 %v160
  %179 = vmatprep.subr.bf16.mxu0 0
  %180 = vmatpush1.bf16.msra.mxu0 %v161
  %181 = vmatprep.subr.bf16.mxu0 0
  %182 = vmatpush1.bf16.msra.mxu0 %v162
  %183 = vmatprep.subr.bf16.mxu0 0
  %184 = vmatpush1.bf16.msra.mxu0 %v163
  %185 = vmatprep.subr.bf16.mxu0 0
  %186 = vmatpush1.bf16.msra.mxu0 %v164
  %187 = vmatprep.subr.bf16.mxu0 0
  %188 = vmatpush1.bf16.msra.mxu0 %v165
  %189 = vmatprep.subr.bf16.mxu0 0
  %190 = vmatpush1.bf16.msra.mxu0 %v166
  %191 = vmatprep.subr.bf16.mxu0 0
  %192 = vmatpush1.bf16.msra.mxu0 0
  %193 = vmatprep.subr.bf16.mxu0 0
  %194 = vmatpush1.bf16.msra.mxu0 0
  %195 = vmatprep.subr.bf16.mxu0 0
  %196 = vmatpush1.bf16.msra.mxu0 0
  %197 = vmatprep.subr.bf16.mxu0 0
  %198 = vmatpush1.bf16.msra.mxu0 0
  %199 = vmatprep.subr.bf16.mxu0 0
  %200 = vmatpush1.bf16.msra.mxu0 0
  %201 = vmatprep.subr.bf16.mxu0 0
  %202 = vmatpush1.bf16.msra.mxu0 0
  %203 = vmatprep.subr.bf16.mxu0 0
  %204 = vmatpush1.bf16.msra.mxu0 0
  %205 = vmatprep.subr.bf16.mxu0 0
  %206 = vmatpush1.bf16.msra.mxu0 0
  %207 = vmatprep.mubr.bf16.mxu0 0
  %208 = vmatmul.mubr.bf16.gmra.mrb[0].mxu0 %v102
  %v209 = vpop.f32.mrb[0].mxu0
  %v210 = vadd.f32 %v125, %v209
  %v211 = vpop.f32.mrb[0].mxu0
  %v212 = vpop.f32.mrb[0].mxu0
  %v213 = vadd.f32 %v125, %v212
  %v214 = vpop.f32.mrb[0].mxu0
  %215 = vmatprep.mubr.bf16.mxu0 0
  %216 = vmatmul.mubr.bf16.gmra.mrb[0].mxu0 %v103
  %v217 = vpop.f32.mrb[0].mxu0
  %v218 = vadd.f32 %v125, %v217
  %v219 = vpop.f32.mrb[0].mxu0
  %v220 = vpop.f32.mrb[0].mxu0
  %v221 = vadd.f32 %v125, %v220
  %v222 = vpop.f32.mrb[0].mxu0
  %223 = vdwg.mxu0
  %vm224 = vcmask 31744
  %225 = vst.msk [vmem:[%s5] sm:$0xff] %vm224, %v210
  %226 = vst.msk [vmem:[%s5 + $0x8] sm:$0xff] %vm224, %v213
  %227 = vst.msk [vmem:[%s5 + $0x10] sm:$0xff] %vm224, %v218
  %228 = vst.msk [vmem:[%s5 + $0x18] sm:$0xff] %vm224, %v221
  // Predicated region
  $region22: #{dqn_forward.1} parent=0 // pred_check
    _
  $region23: #{dqn_forward.1} parent=0 // pred_check_branch
    %230 = sbr.rel (0) target = $region25
  $region24: #{dqn_forward.1} parent=0 // pred_region
    _
  $region25: #{dqn_forward.1} parent=0 // pred_fallthru
    _
  // Predicated region
  $region26: #{dqn_forward.1} parent=0 // pred_check
    _
  $region27: #{dqn_forward.1} parent=0 // pred_check_branch
    %232 = sbr.rel (0) target = $region29
  $region28: #{dqn_forward.1} parent=0 // pred_region
    _
  $region29: #{dqn_forward.1} parent=0 // pred_fallthru
    _

</llo_original>
